<compile_context>
chip_gen: v7x
topology: tpu7x:2x2x1
jax: 0.10.0
libtpu: 0.0.40
codegen_flags: <defaults>
</compile_context>

<pallas_src>
import functools
import math

import jax
import jax.numpy as jnp
import numpy as np
from jax import lax
from jax.experimental import pallas as pl
from jax.experimental.pallas import tpu as pltpu


def _elu(z):
    # ELU(alpha=1): z if z > 0 else exp(z) - 1.
    # TODO(synk): switch to jnp.expm1 (bit-closer to PyTorch for tiny |z|) once its
    # Mosaic lowering is confirmed; absolute difference here is < 1e-7.
    return jnp.where(z > 0, z, jnp.exp(jnp.minimum(z, 0.0)) - 1.0)


def _residual_block_kernel(x_ref, w1_ref, b1_ref, w2_ref, b2_ref, o_ref,
                           *, L, NL, tile_nl):
    # x_ref : (Cin, tile_nl)   channels (sublanes) x flattened positions (lanes)
    # w1_ref: (Cout, 3*Cin)    fused taps [k=0 | k=1 | k=2]
    # b1_ref: (Cout, 1)  f32
    # w2_ref: (Cin, 3*Cout)
    # b2_ref: (Cin, 1)   f32
    # o_ref : (Cin, tile_nl)
    x = x_ref[...]
    cdt = x.dtype                       # MXU operand dtype (f32, or bf16 fast path)

    # Batch-boundary / padded-tail masks, generated in-kernel.
    # Chunk starts are L-aligned, so (global_pos % L) == (local % L).
    local = lax.broadcasted_iota(jnp.int32, (1, tile_nl), 1)
    pos = pl.program_id(0) * tile_nl + local
    valid = pos < NL
    if (L & (L - 1)) == 0:              # power-of-two L: cheap bitwise mod
        r = jnp.bitwise_and(local, L - 1)
    else:
        r = local % L
    m_left = jnp.logical_and(r != 0, valid).astype(cdt)
    m_right = jnp.logical_and(r != (L - 1), valid).astype(cdt)

    def conv3(inp, w, b):
        # +/-1 position shifts via XLU lane rotation + boundary masks.
        left = pltpu.roll(inp, shift=1, axis=1) * m_left             # inp[:, l-1]
        right = pltpu.roll(inp, shift=tile_nl - 1, axis=1) * m_right  # inp[:, l+1]
        x3 = jnp.concatenate([left, inp, right], axis=0)             # (3*C, tile_nl)
        return jnp.dot(w, x3, preferred_element_type=jnp.float32) + b

    h = _elu(conv3(x, w1_ref[...], b1_ref[...]))                 # (Cout, T) f32
    y = _elu(conv3(h.astype(cdt), w2_ref[...], b2_ref[...]))     # (Cin,  T) f32
    o_ref[...] = (x.astype(jnp.float32) + y).astype(o_ref.dtype)


def _choose_tile_nl(L, NL, target_lanes=4096):
    """Tile must be a multiple of 128 (lanes) and of L (no cross-chunk halo)."""
    base = L * 128 // math.gcd(L, 128)            # lcm(L, 128)
    needed = base * (-(-NL // base))               # smallest L/128-aligned cover
    target = base * max(1, target_lanes // base)
    return min(needed, target)


def residual_block_lane_dense(x_cl, wf1, b1c, wf2, b2c, *, L, NL, tile_nl,
                              out_dtype=jnp.float32):
    """Lane-dense entry point.
       x_cl: (Cin, NLp) with NLp a multiple of tile_nl; positions ordered
             (batch-major, length-minor), zero-padded past NL.
       wf1: (Cout, 3*Cin), wf2: (Cin, 3*Cout) fused-tap weights; b*c: (*, 1) f32."""
    Cin, NLp = x_cl.shape
    Cout = wf1.shape[0]
    assert NLp % tile_nl == 0 and tile_nl % 128 == 0 and tile_nl % L == 0

    kernel = functools.partial(_residual_block_kernel, L=L, NL=NL, tile_nl=tile_nl)
    return pl.pallas_call(
        kernel,
        out_shape=jax.ShapeDtypeStruct((Cin, NLp), out_dtype),
        grid_spec=pltpu.PrefetchScalarGridSpec(
            num_scalar_prefetch=0,
            grid=(NLp // tile_nl,),
            in_specs=[
                pl.BlockSpec((Cin, tile_nl), lambda i: (0, i)),
                pl.BlockSpec((Cout, 3 * Cin), lambda i: (0, 0)),
                pl.BlockSpec((Cout, 1), lambda i: (0, 0)),
                pl.BlockSpec((Cin, 3 * Cout), lambda i: (0, 0)),
                pl.BlockSpec((Cin, 1), lambda i: (0, 0)),
            ],
            out_specs=pl.BlockSpec((Cin, tile_nl), lambda i: (0, i)),
        ),
        compiler_params=pltpu.CompilerParams(
            dimension_semantics=("parallel",),        # shards chunks across v7x cores
            vmem_limit_bytes=48 * 1024 * 1024,        # safe on v7x (64 MiB physical)
        ),
    )(x_cl, wf1, b1c, wf2, b2c)


def residual_block(x_ncl, w1_pt, b1, w2_pt, b2, *, use_bf16_matmul=False,
                   tile_target=4096):
    """PyTorch-layout wrapper.
       x_ncl: (N, Cin, L); w1_pt: (Cout, Cin, 3); b1: (Cout,);
       w2_pt: (Cin, Cout, 3); b2: (Cin,).  Returns (N, Cin, L).
       NOTE: in a full model keep the lane-dense (C, N*L) layout persistent
       across layers and call residual_block_lane_dense directly; the
       transpose/pad/transpose here adds extra HBM passes for a single layer."""
    N, Cin, L = x_ncl.shape
    Cout = w1_pt.shape[0]
    NL = N * L
    tile_nl = _choose_tile_nl(L, NL, tile_target)
    NLp = tile_nl * (-(-NL // tile_nl))

    # lane-dense slab: (Cin, N*L) padded to a multiple of tile_nl
    x_cl = jnp.transpose(x_ncl, (1, 0, 2)).reshape(Cin, NL)
    x_cl = jnp.pad(x_cl, ((0, 0), (0, NLp - NL)))

    # fuse the 3 taps on the host:  Wf[:, k*C + c] = W_pt[:, c, k]
    wf1 = jnp.transpose(w1_pt, (0, 2, 1)).reshape(Cout, 3 * Cin)
    wf2 = jnp.transpose(w2_pt, (0, 2, 1)).reshape(Cin, 3 * Cout)
    b1c = b1.reshape(Cout, 1).astype(jnp.float32)
    b2c = b2.reshape(Cin, 1).astype(jnp.float32)

    if use_bf16_matmul:
        # Halve HBM read bytes: activations + weights live in bf16 in HBM.
        # Accumulation, bias, ELU and the residual add stay f32 inside the kernel.
        x_cl = x_cl.astype(jnp.bfloat16)
        wf1 = wf1.astype(jnp.bfloat16)
        wf2 = wf2.astype(jnp.bfloat16)

    out = residual_block_lane_dense(x_cl, wf1, b1c, wf2, b2c,
                                    L=L, NL=NL, tile_nl=tile_nl,
                                    out_dtype=x_ncl.dtype)
    return jnp.transpose(out[:, :NL].reshape(Cin, N, L), (1, 0, 2))


def _reference(x_ncl, w1_pt, b1, w2_pt, b2):
    # plain-JAX reference, same math as the PyTorch module (NCL, padding='same')
    def conv3(x, w, b):
        xp = jnp.pad(x, ((0, 0), (0, 0), (1, 1)))
        return (jnp.einsum("ncl,dc->ndl", xp[:, :, 0:-2], w[:, :, 0])
                + jnp.einsum("ncl,dc->ndl", xp[:, :, 1:-1], w[:, :, 1])
                + jnp.einsum("ncl,dc->ndl", xp[:, :, 2:], w[:, :, 2])
                + b[None, :, None])
    h = _elu(conv3(x_ncl, w1_pt, b1))
    h = _elu(conv3(h, w2_pt, b2))
    return x_ncl + h


def _make_params(key, inp_filt, out_filt, N, L):
    k_x, k_w1, k_b1, k_w2, k_b2 = jax.random.split(key, 5)
    x = jax.random.normal(k_x, (N, inp_filt, L), dtype=jnp.float32)
    s1 = 1.0 / np.sqrt(inp_filt * 3)
    s2 = 1.0 / np.sqrt(out_filt * 3)
    w1 = jax.random.uniform(k_w1, (out_filt, inp_filt, 3), jnp.float32, -s1, s1)
    b1 = jax.random.uniform(k_b1, (out_filt,), jnp.float32, -s1, s1)
    w2 = jax.random.uniform(k_w2, (inp_filt, out_filt, 3), jnp.float32, -s2, s2)
    b2 = jax.random.uniform(k_b2, (inp_filt,), jnp.float32, -s2, s2)
    return x, w1, b1, w2, b2


if __name__ == "__main__":
    key = jax.random.PRNGKey(0)
    k_small, k_big = jax.random.split(key, 2)

    # ---- small case (single chunk): N=2, Cin=8, Cout=16, L=16 ----
    x, w1, b1, w2, b2 = _make_params(k_small, inp_filt=8, out_filt=16, N=2, L=16)
    ref = _reference(x, w1, b1, w2, b2)

    out = jax.block_until_ready(residual_block(x, w1, b1, w2, b2))
    assert out.shape == x.shape
    np.testing.assert_allclose(np.asarray(out), np.asarray(ref), rtol=1e-5, atol=1e-5)

    # bf16-MXU / bf16-in-HBM fast path (v6e/v7x); accumulation + ELU + residual in f32.
    out_bf16 = jax.block_until_ready(
        residual_block(x, w1, b1, w2, b2, use_bf16_matmul=True))
    np.testing.assert_allclose(np.asarray(out_bf16), np.asarray(ref),
                               rtol=5e-2, atol=5e-2)

    # ---- chunked-grid case (exercises multi-step pipeline + in-kernel masks) ----
    xb, w1b, b1b, w2b, b2b = _make_params(k_big, inp_filt=8, out_filt=16, N=16, L=64)
    refb = _reference(xb, w1b, b1b, w2b, b2b)
    outb = jax.block_until_ready(
        residual_block(xb, w1b, b1b, w2b, b2b, tile_target=256))  # 4 chunks of 256
    np.testing.assert_allclose(np.asarray(outb), np.asarray(refb),
                               rtol=1e-5, atol=1e-5)

    print("KERNEL_OK")
</pallas_src>

<mosaic_0001>
module attributes {stable_mosaic.version = 11 : i64} {
  func.func @_residual_block_kernel(%arg0: i32, %arg1: memref<8x128xf32, #tpu.memory_space<vmem>>, %arg2: memref<16x24xf32, #tpu.memory_space<vmem>>, %arg3: memref<16x1xf32, #tpu.memory_space<vmem>>, %arg4: memref<8x48xf32, #tpu.memory_space<vmem>>, %arg5: memref<8x1xf32, #tpu.memory_space<vmem>>, %arg6: memref<8x128xf32, #tpu.memory_space<vmem>>) attributes {dimension_semantics = [#tpu.dimension_semantics<parallel>], iteration_bounds = array<i64: 1>, scalar_prefetch = 0 : i64, scratch_operands = 0 : i64, tpu.core_type = #tpu.core_type<tc>, window_params = [{transform_indices = @transform_0, window_bounds = array<i64: 8, 128>}, {pipeline_mode = #tpu.pipeline_mode<synchronous>, transform_indices = @transform_1, window_bounds = array<i64: 16, 24>}, {pipeline_mode = #tpu.pipeline_mode<synchronous>, transform_indices = @transform_2, window_bounds = array<i64: 16, 1>}, {pipeline_mode = #tpu.pipeline_mode<synchronous>, transform_indices = @transform_3, window_bounds = array<i64: 8, 48>}, {pipeline_mode = #tpu.pipeline_mode<synchronous>, transform_indices = @transform_4, window_bounds = array<i64: 8, 1>}, {transform_indices = @transform_5, window_bounds = array<i64: 8, 128>}]} {
    %c0 = arith.constant 0 : index
    %c0_0 = arith.constant 0 : index
    %0 = vector.load %arg1[%c0, %c0_0] : memref<8x128xf32, #tpu.memory_space<vmem>>, vector<8x128xf32>
    %1 = tpu.iota {dimensions = array<i32: 1>} : vector<1x128xi32>
    %c128_i32 = arith.constant 128 : i32
    %2 = arith.muli %arg0, %c128_i32 : i32
    %3 = vector.broadcast %2 : i32 to vector<1x128xi32>
    %4 = arith.addi %3, %1 : vector<1x128xi32>
    %c32_i32 = arith.constant 32 : i32
    %5 = vector.broadcast %c32_i32 : i32 to vector<1x128xi32>
    %6 = arith.cmpi slt, %4, %5 : vector<1x128xi32>
    %c15_i32 = arith.constant 15 : i32
    %7 = vector.broadcast %c15_i32 : i32 to vector<1x128xi32>
    %8 = arith.andi %1, %7 : vector<1x128xi32>
    %c0_i32 = arith.constant 0 : i32
    %9 = vector.broadcast %c0_i32 : i32 to vector<1x128xi32>
    %10 = arith.cmpi ne, %8, %9 : vector<1x128xi32>
    %11 = arith.andi %10, %6 : vector<1x128xi1>
    %12 = arith.extui %11 : vector<1x128xi1> to vector<1x128xi32>
    %13 = arith.sitofp %12 : vector<1x128xi32> to vector<1x128xf32>
    %c15_i32_1 = arith.constant 15 : i32
    %14 = vector.broadcast %c15_i32_1 : i32 to vector<1x128xi32>
    %15 = arith.cmpi ne, %8, %14 : vector<1x128xi32>
    %16 = arith.andi %15, %6 : vector<1x128xi1>
    %17 = arith.extui %16 : vector<1x128xi1> to vector<1x128xi32>
    %18 = arith.sitofp %17 : vector<1x128xi32> to vector<1x128xf32>
    %c0_2 = arith.constant 0 : index
    %c0_3 = arith.constant 0 : index
    %19 = vector.load %arg2[%c0_2, %c0_3] : memref<16x24xf32, #tpu.memory_space<vmem>>, vector<16x24xf32>
    %c0_4 = arith.constant 0 : index
    %c0_5 = arith.constant 0 : index
    %20 = vector.load %arg3[%c0_4, %c0_5] : memref<16x1xf32, #tpu.memory_space<vmem>>, vector<16x1xf32>
    %c1_i32 = arith.constant 1 : i32
    %21 = tpu.dynamic_rotate %0 by %c1_i32 dim 1 : vector<8x128xf32>, i32 -> vector<8x128xf32>
    %22 = vector.broadcast %13 : vector<1x128xf32> to vector<8x128xf32>
    %23 = arith.mulf %21, %22 : vector<8x128xf32>
    %c127_i32 = arith.constant 127 : i32
    %24 = tpu.dynamic_rotate %0 by %c127_i32 dim 1 : vector<8x128xf32>, i32 -> vector<8x128xf32>
    %25 = vector.broadcast %18 : vector<1x128xf32> to vector<8x128xf32>
    %26 = arith.mulf %24, %25 : vector<8x128xf32>
    %27 = tpu.concatenate %23, %0, %26 in 0 : vector<8x128xf32>, vector<8x128xf32>, vector<8x128xf32> -> vector<24x128xf32>
    %cst = arith.constant dense<0.000000e+00> : vector<16x128xf32>
    %28 = tpu.matmul %19, %27, %cst {dimension_numbers = #tpu.dot_dimension_numbers<[1], [0], [0], [1], [0, 0, 1, 1], [], []>} : vector<16x24xf32>, vector<24x128xf32>, vector<16x128xf32> -> vector<16x128xf32>
    %29 = vector.broadcast %20 : vector<16x1xf32> to vector<16x128xf32>
    %30 = arith.addf %28, %29 : vector<16x128xf32>
    %cst_6 = arith.constant 0.000000e+00 : f32
    %31 = vector.broadcast %cst_6 : f32 to vector<16x128xf32>
    %32 = arith.cmpf ogt, %30, %31 : vector<16x128xf32>
    %cst_7 = arith.constant 0.000000e+00 : f32
    %33 = vector.broadcast %cst_7 : f32 to vector<16x128xf32>
    %34 = arith.minimumf %30, %33 : vector<16x128xf32>
    %35 = math.exp %34 : vector<16x128xf32>
    %cst_8 = arith.constant 1.000000e+00 : f32
    %36 = vector.broadcast %cst_8 : f32 to vector<16x128xf32>
    %37 = arith.subf %35, %36 : vector<16x128xf32>
    %38 = arith.select %32, %30, %37 : vector<16x128xi1>, vector<16x128xf32>
    %c0_9 = arith.constant 0 : index
    %c0_10 = arith.constant 0 : index
    %39 = vector.load %arg4[%c0_9, %c0_10] : memref<8x48xf32, #tpu.memory_space<vmem>>, vector<8x48xf32>
    %c0_11 = arith.constant 0 : index
    %c0_12 = arith.constant 0 : index
    %40 = vector.load %arg5[%c0_11, %c0_12] : memref<8x1xf32, #tpu.memory_space<vmem>>, vector<8x1xf32>
    %c1_i32_13 = arith.constant 1 : i32
    %41 = tpu.dynamic_rotate %38 by %c1_i32_13 dim 1 : vector<16x128xf32>, i32 -> vector<16x128xf32>
    %42 = vector.broadcast %13 : vector<1x128xf32> to vector<16x128xf32>
    %43 = arith.mulf %41, %42 : vector<16x128xf32>
    %c127_i32_14 = arith.constant 127 : i32
    %44 = tpu.dynamic_rotate %38 by %c127_i32_14 dim 1 : vector<16x128xf32>, i32 -> vector<16x128xf32>
    %45 = vector.broadcast %18 : vector<1x128xf32> to vector<16x128xf32>
    %46 = arith.mulf %44, %45 : vector<16x128xf32>
    %47 = tpu.concatenate %43, %38, %46 in 0 : vector<16x128xf32>, vector<16x128xf32>, vector<16x128xf32> -> vector<48x128xf32>
    %cst_15 = arith.constant dense<0.000000e+00> : vector<8x128xf32>
    %48 = tpu.matmul %39, %47, %cst_15 {dimension_numbers = #tpu.dot_dimension_numbers<[1], [0], [0], [1], [0, 0, 1, 1], [], []>} : vector<8x48xf32>, vector<48x128xf32>, vector<8x128xf32> -> vector<8x128xf32>
    %49 = vector.broadcast %40 : vector<8x1xf32> to vector<8x128xf32>
    %50 = arith.addf %48, %49 : vector<8x128xf32>
    %cst_16 = arith.constant 0.000000e+00 : f32
    %51 = vector.broadcast %cst_16 : f32 to vector<8x128xf32>
    %52 = arith.cmpf ogt, %50, %51 : vector<8x128xf32>
    %cst_17 = arith.constant 0.000000e+00 : f32
    %53 = vector.broadcast %cst_17 : f32 to vector<8x128xf32>
    %54 = arith.minimumf %50, %53 : vector<8x128xf32>
    %55 = math.exp %54 : vector<8x128xf32>
    %cst_18 = arith.constant 1.000000e+00 : f32
    %56 = vector.broadcast %cst_18 : f32 to vector<8x128xf32>
    %57 = arith.subf %55, %56 : vector<8x128xf32>
    %58 = arith.select %52, %50, %57 : vector<8x128xi1>, vector<8x128xf32>
    %59 = arith.addf %0, %58 : vector<8x128xf32>
    %c0_19 = arith.constant 0 : index
    %c0_20 = arith.constant 0 : index
    %60 = vector.load %arg6[%c0_19, %c0_20] : memref<8x128xf32, #tpu.memory_space<vmem>>, vector<8x128xf32>
    tpu.vector_store %arg6[%c0_19, %c0_20], %59 {strides = array<i32>} : memref<8x128xf32, #tpu.memory_space<vmem>>, vector<8x128xf32>,
    return
  }
  func.func @transform_0(%arg0: i32) -> (i32, i32) {
    %c0_i32 = arith.constant 0 : i32
    %c0_i32_0 = arith.constant 0 : i32
    return %c0_i32, %arg0 : i32, i32
  }
  func.func @transform_1(%arg0: i32) -> (i32, i32) {
    %c0_i32 = arith.constant 0 : i32
    %c0_i32_0 = arith.constant 0 : i32
    %c0_i32_1 = arith.constant 0 : i32
    return %c0_i32, %c0_i32_0 : i32, i32
  }
  func.func @transform_2(%arg0: i32) -> (i32, i32) {
    %c0_i32 = arith.constant 0 : i32
    %c0_i32_0 = arith.constant 0 : i32
    %c0_i32_1 = arith.constant 0 : i32
    return %c0_i32, %c0_i32_0 : i32, i32
  }
  func.func @transform_3(%arg0: i32) -> (i32, i32) {
    %c0_i32 = arith.constant 0 : i32
    %c0_i32_0 = arith.constant 0 : i32
    %c0_i32_1 = arith.constant 0 : i32
    return %c0_i32, %c0_i32_0 : i32, i32
  }
  func.func @transform_4(%arg0: i32) -> (i32, i32) {
    %c0_i32 = arith.constant 0 : i32
    %c0_i32_0 = arith.constant 0 : i32
    %c0_i32_1 = arith.constant 0 : i32
    return %c0_i32, %c0_i32_0 : i32, i32
  }
  func.func @transform_5(%arg0: i32) -> (i32, i32) {
    %c0_i32 = arith.constant 0 : i32
    %c0_i32_0 = arith.constant 0 : i32
    return %c0_i32, %arg0 : i32, i32
  }
}

</mosaic_0001>

<llo_original>
// kernel: tpu_custom_call.1
$region0: #{tpu_custom_call.1}
  #allocation0 [shape = 'u32[]', space=smem, size = 0x4, offset = 0x4, fixed_abs, tag = 'smem constant byte address 0x4 - core index']
  #allocation1 [shape = 'u32[144,128]{1,0:T(1,128)}', space=vmem, size = 0x12000, scoped, tag = 'internal scratch']
  %s0 = inlined_call_operand.vmem [shape: f32[8,128], index: 0, kind: input, shape index: {}]
  %s1 = inlined_call_operand.vmem [shape: f32[16,24], index: 1, kind: input, shape index: {}]
  %s2 = inlined_call_operand.vmem [shape: f32[16,1], index: 2, kind: input, shape index: {}]
  %s3 = inlined_call_operand.vmem [shape: f32[8,48], index: 3, kind: input, shape index: {}]
  %s4 = inlined_call_operand.vmem [shape: f32[8,1], index: 4, kind: input, shape index: {}]
  %s5 = inlined_call_operand.hbm [shape: f32[8,128], index: 5, kind: output, shape index: {}]
  %s6 = sld [smem:[#allocation0]]
  $region30: #{tpu_custom_call.1} parent=0
    _
  %s8 = ssub.s32 1, %s6
  %s9 = scalar_select 0, %s8, %s6
  $region1: #{tpu_custom_call.1} parent=0
    #allocation2 [shape = 'u8[4096]{0}', space=vmem, size = 0x1000, scoped, tag = 'output window, operand 0, single buffered']
    #allocation3 [shape = 's32[1]{0}', space=sflag, size = 0x4, scoped, tag = 'scoped memory for tpu_custom_call.1']
    %10 = vsyncpa [#allocation3], 0
    // Predicated region
    $region2: #{tpu_custom_call.1} parent=1 // pred_check
      _
    $region3: #{tpu_custom_call.1} parent=1 // pred_check_branch
      %12 = sbr.rel (0) target = $region5
    $region4: #{tpu_custom_call.1} parent=1 // pred_region
      _
    $region5: #{tpu_custom_call.1} parent=1 // pred_fallthru
      _
    // Predicated region
    $region6: #{tpu_custom_call.1} parent=1 // pred_check
      _
    $region7: #{tpu_custom_call.1} parent=1 // pred_check_branch
      %14 = sbr.rel (0) target = $region9
    $region8: #{tpu_custom_call.1} parent=1 // pred_region
      _
    $region9: #{tpu_custom_call.1} parent=1 // pred_fallthru
      _
    // Predicated region
    $region10: #{tpu_custom_call.1} parent=1 // pred_check
      _
    $region11: #{tpu_custom_call.1} parent=1 // pred_check_branch
      %16 = sbr.rel (0) target = $region13
    $region12: #{tpu_custom_call.1} parent=1 // pred_region
      _
    $region13: #{tpu_custom_call.1} parent=1 // pred_fallthru
      _
    // Predicated region
    $region14: #{tpu_custom_call.1} parent=1 // pred_check
      _
    $region15: #{tpu_custom_call.1} parent=1 // pred_check_branch
      %18 = sbr.rel (0) target = $region17
    $region16: #{tpu_custom_call.1} parent=1 // pred_region
      _
    $region17: #{tpu_custom_call.1} parent=1 // pred_fallthru
      _
    // Predicated region
    $region18: #{tpu_custom_call.1} parent=1 // pred_check
      _
    $region19: #{tpu_custom_call.1} parent=1 // pred_check_branch
      %20 = sbr.rel (0) target = $region21
    $region20: #{tpu_custom_call.1} parent=1 // pred_region
      _
    $region21: #{tpu_custom_call.1} parent=1 // pred_fallthru
      _
    %v21 = vld [vmem:[%s0] sm:$0xff]
    %v22 = vlaneseq
    %v23 = vand.u32 %v22, 127
    %s24 = smul.u32 0, 128
    %v25 = vstv %s24
    %v26 = vadd.s32 %v25, %v23
    %vm27 = vcmp.lt.s32.totalorder %v26, 32
    %v28 = vand.u32 %v23, 15
    %vm29 = vcmp.ne.s32.totalorder %v28, 0
    %vm30 = vmand %vm29, %vm27
    %v31 = vsel %vm30, 1, 0
    %v32 = vcvt.s32.f32 %v31
    %vm33 = vcmp.ne.s32.totalorder %v28, 15
    %vm34 = vmand %vm33, %vm27
    %v35 = vsel %vm34, 1, 0
    %v36 = vcvt.s32.f32 %v35
    %v37 = vld [vmem:[%s1] sm:$0xff]
    %v38 = vld [vmem:[%s1 + $0x8] sm:$0xff]
    %v39 = vld [vmem:[%s2] sm:$0xff]
    %v40 = vld [vmem:[%s2 + $0x8] sm:$0xff]
    %41 = vrot.lane.b32.xlu0 %v21, 1
    %v42 = vpop.permute.xlu0 %41
    %v43 = vmul.f32 %v42, %v32
    %44 = vrot.lane.b32.xlu0 %v21, 127
    %v45 = vpop.permute.xlu0 %44
    %v46 = vmul.f32 %v45, %v36
    %48 = vset.pattern.permute.xlu0 0
    %49 = vperm.xlu0 %48, %v39
    %v50 = vpop.permute.xlu0 %49
    %53 = vset.pattern.permute.xlu0 0
    %54 = vperm.xlu0 %53, %v40
    %v55 = vpop.permute.xlu0 %54
    %vm57 = vcmask 195584
    %v59 = vsel %vm57, %v37, 0
    %v62 = vsel %vm57, %v38, 0
    %64 = vmatprep.subr.mxu0 0.0
    %65 = vmatpush1.msra.mxu0 %v43
    %66 = vmatprep.subr.mxu0 0.0
    %67 = vmatpush1.msra.mxu0 %v21
    %68 = vmatprep.subr.mxu0 0.0
    %69 = vmatpush1.msra.mxu0 %v46
    %70 = vmatprep.subr.mxu0 0.0
    %71 = vmatpush1.msra.mxu0 0.0
    %72 = vmatprep.subr.mxu0 0.0
    %73 = vmatpush1.msra.mxu0 0.0
    %74 = vmatprep.subr.mxu0 0.0
    %75 = vmatpush1.msra.mxu0 0.0
    %76 = vmatprep.subr.mxu0 0.0
    %77 = vmatpush1.msra.mxu0 0.0
    %78 = vmatprep.subr.mxu0 0.0
    %79 = vmatpush1.msra.mxu0 0.0
    %80 = vmatprep.subr.mxu0 0.0
    %81 = vmatpush1.msra.mxu0 0.0
    %82 = vmatprep.subr.mxu0 0.0
    %83 = vmatpush1.msra.mxu0 0.0
    %84 = vmatprep.subr.mxu0 0.0
    %85 = vmatpush1.msra.mxu0 0.0
    %86 = vmatprep.subr.mxu0 0.0
    %87 = vmatpush1.msra.mxu0 0.0
    %88 = vmatprep.subr.mxu0 0.0
    %89 = vmatpush1.msra.mxu0 0.0
    %90 = vmatprep.subr.mxu0 0.0
    %91 = vmatpush1.msra.mxu0 0.0
    %92 = vmatprep.subr.mxu0 0.0
    %93 = vmatpush1.msra.mxu0 0.0
    %94 = vmatprep.subr.mxu0 0.0
    %95 = vmatpush1.msra.mxu0 0.0
    %96 = vmatprep.subr.mxu0 0.0
    %97 = vmatpush1.msra.mxu0 0.0
    %98 = vmatprep.subr.mxu0 0.0
    %99 = vmatpush1.msra.mxu0 0.0
    %100 = vmatprep.subr.mxu0 0.0
    %101 = vmatpush1.msra.mxu0 0.0
    %102 = vmatprep.subr.mxu0 0.0
    %103 = vmatpush1.msra.mxu0 0.0
    %104 = vmatprep.subr.mxu0 0.0
    %105 = vmatpush1.msra.mxu0 0.0
    %106 = vmatprep.subr.mxu0 0.0
    %107 = vmatpush1.msra.mxu0 0.0
    %108 = vmatprep.subr.mxu0 0.0
    %109 = vmatpush1.msra.mxu0 0.0
    %110 = vmatprep.subr.mxu0 0.0
    %111 = vmatpush1.msra.mxu0 0.0
    %112 = vmatprep.subr.mxu0 0.0
    %113 = vmatpush1.msra.mxu0 0.0
    %114 = vmatprep.subr.mxu0 0.0
    %115 = vmatpush1.msra.mxu0 0.0
    %116 = vmatprep.subr.mxu0 0.0
    %117 = vmatpush1.msra.mxu0 0.0
    %118 = vmatprep.subr.mxu0 0.0
    %119 = vmatpush1.msra.mxu0 0.0
    %120 = vmatprep.subr.mxu0 0.0
    %121 = vmatpush1.msra.mxu0 0.0
    %122 = vmatprep.subr.mxu0 0.0
    %123 = vmatpush1.msra.mxu0 0.0
    %124 = vmatprep.subr.mxu0 0.0
    %125 = vmatpush1.msra.mxu0 0.0
    %126 = vmatprep.subr.mxu0 0.0
    %127 = vmatpush1.msra.mxu0 0.0
    %128 = vmatprep.mubr.f32.mxu0 0.0
    %129 = vmatmul.mubr.f32.gmra.mrb[0].mxu0 %v59
    %v130 = vpop.f32.mrb[0].mxu0
    %v131 = vadd.f32 %v50, %v130
    %v132 = vpop.f32.mrb[0].mxu0
    %133 = vmatprep.mubr.f32.mxu0 0.0
    %134 = vmatmul.mubr.f32.gmra.mrb[0].mxu0 %v62
    %v135 = vpop.f32.mrb[0].mxu0
    %v136 = vadd.f32 %v55, %v135
    %v137 = vpop.f32.mrb[0].mxu0
    %138 = vdwg.mxu0
    %vm139 = vcmp.gt.f32.partialorder %v131, 0.0
    %vm140 = vcmp.gt.f32.partialorder %v136, 0.0
    %v141 = vmin.f32 %v131, 0.0
    %v142 = vmin.f32 %v136, 0.0
    %v143 = vmul.f32 %v141, 1.442695
    %v144 = vpow.pop %v143
    %v145 = vmul.f32 %v142, 1.442695
    %v146 = vpow.pop %v145
    %v147 = vsub.f32 %v144, 1.0
    %v148 = vsub.f32 %v146, 1.0
    %v149 = vsel %vm139, %v131, %v147
    %v150 = vsel %vm140, %v136, %v148
    %v151 = vld [vmem:[%s3] sm:$0xff]
    %v152 = vld [vmem:[%s4] sm:$0xff]
    %153 = vrot.lane.b32.xlu0 %v149, 1
    %v154 = vpop.permute.xlu0 %153
    %155 = vrot.lane.b32.xlu0 %v150, 1
    %v156 = vpop.permute.xlu0 %155
    %v157 = vmul.f32 %v154, %v32
    %v158 = vmul.f32 %v156, %v32
    %159 = vrot.lane.b32.xlu0 %v149, 127
    %v160 = vpop.permute.xlu0 %159
    %161 = vrot.lane.b32.xlu0 %v150, 127
    %v162 = vpop.permute.xlu0 %161
    %v163 = vmul.f32 %v160, %v36
    %v164 = vmul.f32 %v162, %v36
    %166 = vset.pattern.permute.xlu0 0
    %167 = vperm.xlu0 %166, %v152
    %v168 = vpop.permute.xlu0 %167
    %vm170 = vcmask 392192
    %v172 = vsel %vm170, %v151, 0
    %174 = vmatprep.subr.mxu0 0.0
    %175 = vmatpush1.msra.mxu0 %v157
    %176 = vmatprep.subr.mxu0 0.0
    %177 = vmatpush1.msra.mxu0 %v158
    %178 = vmatprep.subr.mxu0 0.0
    %179 = vmatpush1.msra.mxu0 %v149
    %180 = vmatprep.subr.mxu0 0.0
    %181 = vmatpush1.msra.mxu0 %v150
    %182 = vmatprep.subr.mxu0 0.0
    %183 = vmatpush1.msra.mxu0 %v163
    %184 = vmatprep.subr.mxu0 0.0
    %185 = vmatpush1.msra.mxu0 %v164
    %186 = vmatprep.subr.mxu0 0.0
    %187 = vmatpush1.msra.mxu0 0.0
    %188 = vmatprep.subr.mxu0 0.0
    %189 = vmatpush1.msra.mxu0 0.0
    %190 = vmatprep.subr.mxu0 0.0
    %191 = vmatpush1.msra.mxu0 0.0
    %192 = vmatprep.subr.mxu0 0.0
    %193 = vmatpush1.msra.mxu0 0.0
    %194 = vmatprep.subr.mxu0 0.0
    %195 = vmatpush1.msra.mxu0 0.0
    %196 = vmatprep.subr.mxu0 0.0
    %197 = vmatpush1.msra.mxu0 0.0
    %198 = vmatprep.subr.mxu0 0.0
    %199 = vmatpush1.msra.mxu0 0.0
    %200 = vmatprep.subr.mxu0 0.0
    %201 = vmatpush1.msra.mxu0 0.0
    %202 = vmatprep.subr.mxu0 0.0
    %203 = vmatpush1.msra.mxu0 0.0
    %204 = vmatprep.subr.mxu0 0.0
    %205 = vmatpush1.msra.mxu0 0.0
    %206 = vmatprep.subr.mxu0 0.0
    %207 = vmatpush1.msra.mxu0 0.0
    %208 = vmatprep.subr.mxu0 0.0
    %209 = vmatpush1.msra.mxu0 0.0
    %210 = vmatprep.subr.mxu0 0.0
    %211 = vmatpush1.msra.mxu0 0.0
    %212 = vmatprep.subr.mxu0 0.0
    %213 = vmatpush1.msra.mxu0 0.0
    %214 = vmatprep.subr.mxu0 0.0
    %215 = vmatpush1.msra.mxu0 0.0
    %216 = vmatprep.subr.mxu0 0.0
    %217 = vmatpush1.msra.mxu0 0.0
    %218 = vmatprep.subr.mxu0 0.0
    %219 = vmatpush1.msra.mxu0 0.0
    %220 = vmatprep.subr.mxu0 0.0
    %221 = vmatpush1.msra.mxu0 0.0
    %222 = vmatprep.subr.mxu0 0.0
    %223 = vmatpush1.msra.mxu0 0.0
    %224 = vmatprep.subr.mxu0 0.0
    %225 = vmatpush1.msra.mxu0 0.0
    %226 = vmatprep.subr.mxu0 0.0
    %227 = vmatpush1.msra.mxu0 0.0
    %228 = vmatprep.subr.mxu0 0.0
    %229 = vmatpush1.msra.mxu0 0.0
    %230 = vmatprep.subr.mxu0 0.0
    %231 = vmatpush1.msra.mxu0 0.0
    %232 = vmatprep.subr.mxu0 0.0
    %233 = vmatpush1.msra.mxu0 0.0
    %234 = vmatprep.subr.mxu0 0.0
    %235 = vmatpush1.msra.mxu0 0.0
    %236 = vmatprep.subr.mxu0 0.0
    %237 = vmatpush1.msra.mxu0 0.0
    %238 = vmatprep.mubr.f32.mxu0 0.0
    %239 = vmatmul.mubr.f32.gmra.mrb[0].mxu0 %v172
    %v240 = vpop.f32.mrb[0].mxu0
    %v241 = vadd.f32 %v168, %v240
    %v242 = vpop.f32.mrb[0].mxu0
    %243 = vdwg.mxu0
    %vm244 = vcmp.gt.f32.partialorder %v241, 0.0
    %v245 = vmin.f32 %v241, 0.0
    %v246 = vmul.f32 %v245, 1.442695
    %v247 = vpow.pop %v246
    %v248 = vsub.f32 %v247, 1.0
    %v249 = vsel %vm244, %v241, %v248
    %v250 = vadd.f32 %v21, %v249
    %251 = vst [vmem:[#allocation2] sm:$0xff] %v250
    // Predicated region
    $region22: #{tpu_custom_call.1} parent=1 // pred_check
      _
    $region23: #{tpu_custom_call.1} parent=1 // pred_check_branch
      %253 = sbr.rel (0) target = $region25
    $region24: #{tpu_custom_call.1} parent=1 // pred_region
      %s255 = ssub.s32 128, 128
      %256 = vsyncadd [#allocation3], %s255
      %s258 = sshll.u32 [#allocation2], 4
      %s259 = int_to_ptr.vmem [resolvable:$true] %s258
      %261 = dma.vmem_to_hbm [thread:$0]  %s259, 128, %s5, [#allocation3]
    $region25: #{tpu_custom_call.1} parent=1 // pred_fallthru
      _
    // Predicated region
    $region26: #{tpu_custom_call.1} parent=1 // pred_check
      _
    $region27: #{tpu_custom_call.1} parent=1 // pred_check_branch
      %263 = sbr.rel (0) target = $region29
    $region28: #{tpu_custom_call.1} parent=1 // pred_region
      %264 = dma.done [#allocation3], 128
    $region29: #{tpu_custom_call.1} parent=1 // pred_fallthru
      _
    %265 = vsyncpa [#allocation3], 1

</llo_original>
